<compile_context>
chip_gen: v7x
topology: tpu7x:2x2x1
jax: 0.10.0
libtpu: 0.0.40
codegen_flags: <defaults>
</compile_context>

<pallas_src>
import math
import functools

import jax
import jax.numpy as jnp
from jax.experimental import pallas as pl
from jax.experimental.pallas import tpu as pltpu


LOG_SIGMA_MIN = -5.0
LOG_SIGMA_MAX = 2.0
_HALF_LOG_2PI = 0.5 * math.log(2.0 * math.pi)


def _round_up(x: int, m: int) -> int:
    return ((x + m - 1) // m) * m


def actor_kernel(s_ref, w1_ref, b1_ref, w2_ref, b2_ref,
                 wh_ref, bh_ref, eps_ref,
                 act_ref, lp_ref, *,
                 max_action: float, action_dim: int, a_pad: int):
    # ---- trunk: two Linear + ReLU layers (MXU) ----
    x = s_ref[...]
    h1 = jnp.dot(x, w1_ref[...], preferred_element_type=jnp.float32) + b1_ref[...]
    h1 = jnp.maximum(h1, 0.0)
    h2 = jnp.dot(h1, w2_ref[...], preferred_element_type=jnp.float32) + b2_ref[...]
    h2 = jnp.maximum(h2, 0.0)

    # ---- fused heads: one matmul for [mu | log_sigma] ----
    heads = jnp.dot(h2, wh_ref[...], preferred_element_type=jnp.float32) + bh_ref[...]
    mu = heads[:, :a_pad]                                    # [TB, A_pad]
    log_sigma = jnp.clip(heads[:, a_pad:], LOG_SIGMA_MIN, LOG_SIGMA_MAX)
    sigma = jnp.exp(log_sigma)

    # ---- reparameterized sample (eps == 0 <=> deterministic action = mu) ----
    eps = eps_ref[...]
    action = mu + sigma * eps
    tanh_action = jnp.tanh(action)

    # ---- Normal log-prob + tanh correction, one reduction over action axis.
    # z = (action - mu) / sigma == eps exactly, so use eps directly.
    normal_lp = -0.5 * (eps * eps) - log_sigma - _HALF_LOG_2PI   # [TB, A_pad]
    corr = jnp.log(1.0 - tanh_action * tanh_action + 1e-6)       # [TB, A_pad]

    # Mask out padded action lanes so they don't contribute to the sum.
    lane = jax.lax.broadcasted_iota(jnp.int32, (1, a_pad), 1)
    mask = (lane < action_dim).astype(jnp.float32)
    lp = jnp.sum((normal_lp - corr) * mask, axis=-1, keepdims=True)  # [TB, 1]

    act_ref[...] = (tanh_action * max_action).astype(act_ref.dtype)
    # lane-dense log_prob slab (sliced to column 0 in the wrapper)
    lp_ref[...] = jnp.broadcast_to(lp, lp_ref.shape).astype(lp_ref.dtype)


def actor_forward(state, params, eps, *, max_action: float = 1.0):
    """Full Actor forward pass in one Pallas kernel.

    state: [B, state_dim] float32
    eps:   [B, action_dim] float32 standard-normal noise (zeros => deterministic)
    Returns (tanh_action * max_action  [B, A],  log_prob [B]).
    """
    B, state_dim = state.shape
    hidden_dim = params["w1"].shape[1]
    action_dim = params["w_mu"].shape[1]

    # Pad every feature axis to a multiple of 128 lanes.
    s_pad = _round_up(state_dim, 128)
    h_pad = _round_up(hidden_dim, 128)
    a_pad = _round_up(action_dim, 128)
    lp_lanes = 128

    # Batch tile: multiple of 8 sublanes, capped at 256 rows (fits v7x VMEM
    # budget comfortably and amortizes the ~0.35us per-step overhead).
    tb = 256 if B >= 256 else _round_up(B, 8)
    b_pad = _round_up(B, tb)

    f32 = jnp.float32
    state_p = jnp.zeros((b_pad, s_pad), f32).at[:B, :state_dim].set(state)
    eps_p = jnp.zeros((b_pad, a_pad), f32).at[:B, :action_dim].set(eps)

    w1 = jnp.zeros((s_pad, h_pad), f32).at[:state_dim, :hidden_dim].set(params["w1"])
    b1 = jnp.zeros((1, h_pad), f32).at[:, :hidden_dim].set(params["b1"])
    w2 = jnp.zeros((h_pad, h_pad), f32).at[:hidden_dim, :hidden_dim].set(params["w2"])
    b2 = jnp.zeros((1, h_pad), f32).at[:, :hidden_dim].set(params["b2"])

    # Fused head weight/bias: [mu | log_sigma], each padded to a_pad lanes.
    wh = jnp.zeros((h_pad, 2 * a_pad), f32)
    wh = wh.at[:hidden_dim, :action_dim].set(params["w_mu"])
    wh = wh.at[:hidden_dim, a_pad:a_pad + action_dim].set(params["w_ls"])
    bh = jnp.zeros((1, 2 * a_pad), f32)
    bh = bh.at[:, :action_dim].set(params["b_mu"])
    bh = bh.at[:, a_pad:a_pad + action_dim].set(params["b_ls"])

    kernel = functools.partial(actor_kernel, max_action=max_action,
                               action_dim=action_dim, a_pad=a_pad)

    def row_spec(width):
        return pl.BlockSpec((tb, width), lambda i: (i, 0))

    def full_spec(shape):
        return pl.BlockSpec(shape, lambda i: (0, 0))

    act, lp = pl.pallas_call(
        kernel,
        out_shape=(
            jax.ShapeDtypeStruct((b_pad, a_pad), f32),
            jax.ShapeDtypeStruct((b_pad, lp_lanes), f32),
        ),
        grid=(b_pad // tb,),
        in_specs=[
            row_spec(s_pad),                 # state
            full_spec((s_pad, h_pad)),       # w1
            full_spec((1, h_pad)),           # b1
            full_spec((h_pad, h_pad)),       # w2
            full_spec((1, h_pad)),           # b2
            full_spec((h_pad, 2 * a_pad)),   # fused head weight
            full_spec((1, 2 * a_pad)),       # fused head bias
            row_spec(a_pad),                 # eps
        ],
        out_specs=(row_spec(a_pad), row_spec(lp_lanes)),
        compiler_params=pltpu.CompilerParams(
            dimension_semantics=("parallel",)),
    )(state_p, w1, b1, w2, b2, wh, bh, eps_p)

    return act[:B, :action_dim], lp[:B, 0]


def init_actor_params(key, state_dim, action_dim, hidden_dim):
    """Parameter init mirroring the PyTorch module's shapes.

    Weights stored [in, out]. Trunk biases = 0.1 (as in __init__);
    mu / log_sigma weights and biases ~ U(-0.001, 0.001).
    """
    k1, k2, k3, k4, k5, k6 = jax.random.split(key, 6)

    def lin_w(k, fan_in, fan_out):
        bound = 1.0 / math.sqrt(fan_in)
        return jax.random.uniform(k, (fan_in, fan_out), jnp.float32, -bound, bound)

    return {
        "w1": lin_w(k1, state_dim, hidden_dim),
        "b1": jnp.full((1, hidden_dim), 0.1, jnp.float32),
        "w2": lin_w(k2, hidden_dim, hidden_dim),
        "b2": jnp.full((1, hidden_dim), 0.1, jnp.float32),
        "w_mu": jax.random.uniform(k3, (hidden_dim, action_dim), jnp.float32, -0.001, 0.001),
        "b_mu": jax.random.uniform(k4, (1, action_dim), jnp.float32, -0.001, 0.001),
        "w_ls": jax.random.uniform(k5, (hidden_dim, action_dim), jnp.float32, -0.001, 0.001),
        "b_ls": jax.random.uniform(k6, (1, action_dim), jnp.float32, -0.001, 0.001),
    }


if __name__ == "__main__":
    B, STATE_DIM, ACTION_DIM, HIDDEN_DIM = 8, 16, 8, 32
    MAX_ACTION = 1.0

    key = jax.random.PRNGKey(0)
    k_state, k_params, k_eps = jax.random.split(key, 3)

    state = jax.random.normal(k_state, (B, STATE_DIM), jnp.float32)
    params = init_actor_params(k_params, STATE_DIM, ACTION_DIM, HIDDEN_DIM)

    # stochastic pass (rsample) with log_prob
    eps = jax.random.normal(k_eps, (B, ACTION_DIM), jnp.float32)
    action, log_prob = actor_forward(state, params, eps, max_action=MAX_ACTION)

    # deterministic pass (action = mu): eps = 0
    det_action, _ = actor_forward(state, params, jnp.zeros_like(eps),
                                  max_action=MAX_ACTION)

    jax.block_until_ready((action, log_prob, det_action))

    assert action.shape == (B, ACTION_DIM)
    assert log_prob.shape == (B,)
    assert det_action.shape == (B, ACTION_DIM)
    assert bool(jnp.all(jnp.isfinite(action)))
    assert bool(jnp.all(jnp.isfinite(log_prob)))
    print("KERNEL_OK")
</pallas_src>

<mosaic_0001>
module attributes {stable_mosaic.version = 11 : i64} {
  func.func @actor_kernel(%arg0: i32, %arg1: memref<8x128xf32, #tpu.memory_space<vmem>>, %arg2: memref<128x128xf32, #tpu.memory_space<vmem>>, %arg3: memref<1x128xf32, #tpu.memory_space<vmem>>, %arg4: memref<128x128xf32, #tpu.memory_space<vmem>>, %arg5: memref<1x128xf32, #tpu.memory_space<vmem>>, %arg6: memref<128x256xf32, #tpu.memory_space<vmem>>, %arg7: memref<1x256xf32, #tpu.memory_space<vmem>>, %arg8: memref<8x128xf32, #tpu.memory_space<vmem>>, %arg9: memref<8x128xf32, #tpu.memory_space<vmem>>, %arg10: memref<8x128xf32, #tpu.memory_space<vmem>>) attributes {dimension_semantics = [#tpu.dimension_semantics<parallel>], iteration_bounds = array<i64: 1>, scalar_prefetch = 0 : i64, scratch_operands = 0 : i64, tpu.core_type = #tpu.core_type<tc>, window_params = [{transform_indices = @transform_0, window_bounds = array<i64: 8, 128>}, {pipeline_mode = #tpu.pipeline_mode<synchronous>, transform_indices = @transform_1, window_bounds = array<i64: 128, 128>}, {pipeline_mode = #tpu.pipeline_mode<synchronous>, transform_indices = @transform_2, window_bounds = array<i64: 1, 128>}, {pipeline_mode = #tpu.pipeline_mode<synchronous>, transform_indices = @transform_3, window_bounds = array<i64: 128, 128>}, {pipeline_mode = #tpu.pipeline_mode<synchronous>, transform_indices = @transform_4, window_bounds = array<i64: 1, 128>}, {pipeline_mode = #tpu.pipeline_mode<synchronous>, transform_indices = @transform_5, window_bounds = array<i64: 128, 256>}, {pipeline_mode = #tpu.pipeline_mode<synchronous>, transform_indices = @transform_6, window_bounds = array<i64: 1, 256>}, {transform_indices = @transform_7, window_bounds = array<i64: 8, 128>}, {transform_indices = @transform_8, window_bounds = array<i64: 8, 128>}, {transform_indices = @transform_9, window_bounds = array<i64: 8, 128>}]} {
    %c0 = arith.constant 0 : index
    %c0_0 = arith.constant 0 : index
    %0 = vector.load %arg1[%c0, %c0_0] : memref<8x128xf32, #tpu.memory_space<vmem>>, vector<8x128xf32>
    %c0_1 = arith.constant 0 : index
    %c0_2 = arith.constant 0 : index
    %1 = vector.load %arg2[%c0_1, %c0_2] : memref<128x128xf32, #tpu.memory_space<vmem>>, vector<128x128xf32>
    %cst = arith.constant dense<0.000000e+00> : vector<8x128xf32>
    %2 = tpu.matmul %0, %1, %cst {dimension_numbers = #tpu.dot_dimension_numbers<[1], [0], [0], [1], [0, 0, 1, 1], [], []>} : vector<8x128xf32>, vector<128x128xf32>, vector<8x128xf32> -> vector<8x128xf32>
    %c0_3 = arith.constant 0 : index
    %c0_4 = arith.constant 0 : index
    %3 = vector.load %arg3[%c0_3, %c0_4] : memref<1x128xf32, #tpu.memory_space<vmem>>, vector<1x128xf32>
    %4 = vector.broadcast %3 : vector<1x128xf32> to vector<8x128xf32>
    %5 = arith.addf %2, %4 : vector<8x128xf32>
    %cst_5 = arith.constant 0.000000e+00 : f32
    %6 = vector.broadcast %cst_5 : f32 to vector<8x128xf32>
    %7 = arith.maximumf %5, %6 : vector<8x128xf32>
    %c0_6 = arith.constant 0 : index
    %c0_7 = arith.constant 0 : index
    %8 = vector.load %arg4[%c0_6, %c0_7] : memref<128x128xf32, #tpu.memory_space<vmem>>, vector<128x128xf32>
    %cst_8 = arith.constant dense<0.000000e+00> : vector<8x128xf32>
    %9 = tpu.matmul %7, %8, %cst_8 {dimension_numbers = #tpu.dot_dimension_numbers<[1], [0], [0], [1], [0, 0, 1, 1], [], []>} : vector<8x128xf32>, vector<128x128xf32>, vector<8x128xf32> -> vector<8x128xf32>
    %c0_9 = arith.constant 0 : index
    %c0_10 = arith.constant 0 : index
    %10 = vector.load %arg5[%c0_9, %c0_10] : memref<1x128xf32, #tpu.memory_space<vmem>>, vector<1x128xf32>
    %11 = vector.broadcast %10 : vector<1x128xf32> to vector<8x128xf32>
    %12 = arith.addf %9, %11 : vector<8x128xf32>
    %cst_11 = arith.constant 0.000000e+00 : f32
    %13 = vector.broadcast %cst_11 : f32 to vector<8x128xf32>
    %14 = arith.maximumf %12, %13 : vector<8x128xf32>
    %c0_12 = arith.constant 0 : index
    %c0_13 = arith.constant 0 : index
    %15 = vector.load %arg6[%c0_12, %c0_13] : memref<128x256xf32, #tpu.memory_space<vmem>>, vector<128x256xf32>
    %cst_14 = arith.constant dense<0.000000e+00> : vector<8x256xf32>
    %16 = tpu.matmul %14, %15, %cst_14 {dimension_numbers = #tpu.dot_dimension_numbers<[1], [0], [0], [1], [0, 0, 1, 1], [], []>} : vector<8x128xf32>, vector<128x256xf32>, vector<8x256xf32> -> vector<8x256xf32>
    %c0_15 = arith.constant 0 : index
    %c0_16 = arith.constant 0 : index
    %17 = vector.load %arg7[%c0_15, %c0_16] : memref<1x256xf32, #tpu.memory_space<vmem>>, vector<1x256xf32>
    %18 = vector.broadcast %17 : vector<1x256xf32> to vector<8x256xf32>
    %19 = arith.addf %16, %18 : vector<8x256xf32>
    %20 = vector.extract_strided_slice %19 {offsets = [0, 0], sizes = [8, 128], strides = [1, 1]} : vector<8x256xf32> to vector<8x128xf32>
    %21 = vector.extract_strided_slice %19 {offsets = [0, 128], sizes = [8, 128], strides = [1, 1]} : vector<8x256xf32> to vector<8x128xf32>
    %cst_17 = arith.constant -5.000000e+00 : f32
    %cst_18 = arith.constant 2.000000e+00 : f32
    %22 = vector.broadcast %cst_17 : f32 to vector<8x128xf32>
    %23 = arith.maximumf %22, %21 : vector<8x128xf32>
    %24 = vector.broadcast %cst_18 : f32 to vector<8x128xf32>
    %25 = arith.minimumf %24, %23 : vector<8x128xf32>
    %26 = math.exp %25 : vector<8x128xf32>
    %c0_19 = arith.constant 0 : index
    %c0_20 = arith.constant 0 : index
    %27 = vector.load %arg8[%c0_19, %c0_20] : memref<8x128xf32, #tpu.memory_space<vmem>>, vector<8x128xf32>
    %28 = arith.mulf %26, %27 : vector<8x128xf32>
    %29 = arith.addf %20, %28 : vector<8x128xf32>
    %30 = math.tanh %29 : vector<8x128xf32>
    %31 = arith.mulf %27, %27 : vector<8x128xf32>
    %cst_21 = arith.constant -5.000000e-01 : f32
    %32 = vector.broadcast %cst_21 : f32 to vector<8x128xf32>
    %33 = arith.mulf %32, %31 : vector<8x128xf32>
    %34 = arith.subf %33, %25 : vector<8x128xf32>
    %cst_22 = arith.constant 0.918938517 : f32
    %35 = vector.broadcast %cst_22 : f32 to vector<8x128xf32>
    %36 = arith.subf %34, %35 : vector<8x128xf32>
    %37 = arith.mulf %30, %30 : vector<8x128xf32>
    %cst_23 = arith.constant 1.000000e+00 : f32
    %38 = vector.broadcast %cst_23 : f32 to vector<8x128xf32>
    %39 = arith.subf %38, %37 : vector<8x128xf32>
    %cst_24 = arith.constant 9.99999997E-7 : f32
    %40 = vector.broadcast %cst_24 : f32 to vector<8x128xf32>
    %41 = arith.addf %39, %40 : vector<8x128xf32>
    %42 = math.log %41 : vector<8x128xf32>
    %43 = tpu.iota {dimensions = array<i32: 1>} : vector<1x128xi32>
    %c8_i32 = arith.constant 8 : i32
    %44 = vector.broadcast %c8_i32 : i32 to vector<1x128xi32>
    %45 = arith.cmpi slt, %43, %44 : vector<1x128xi32>
    %46 = arith.extui %45 : vector<1x128xi1> to vector<1x128xi32>
    %47 = arith.sitofp %46 : vector<1x128xi32> to vector<1x128xf32>
    %48 = arith.subf %36, %42 : vector<8x128xf32>
    %49 = vector.broadcast %47 : vector<1x128xf32> to vector<8x128xf32>
    %50 = arith.mulf %48, %49 : vector<8x128xf32>
    %cst_25 = arith.constant dense<0.000000e+00> : vector<8xf32>
    %51 = vector.multi_reduction <add>, %50, %cst_25 [1] : vector<8x128xf32> to vector<8xf32>
    %52 = vector.shape_cast %51 : vector<8xf32> to vector<8x1xf32>
    %cst_26 = arith.constant 1.000000e+00 : f32
    %53 = vector.broadcast %cst_26 : f32 to vector<8x128xf32>
    %54 = arith.mulf %30, %53 : vector<8x128xf32>
    %c0_27 = arith.constant 0 : index
    %c0_28 = arith.constant 0 : index
    %55 = vector.load %arg9[%c0_27, %c0_28] : memref<8x128xf32, #tpu.memory_space<vmem>>, vector<8x128xf32>
    tpu.vector_store %arg9[%c0_27, %c0_28], %54 {strides = array<i32>} : memref<8x128xf32, #tpu.memory_space<vmem>>, vector<8x128xf32>,
    %56 = vector.shape_cast %52 : vector<8x1xf32> to vector<8x1xf32>
    %57 = vector.broadcast %56 : vector<8x1xf32> to vector<8x128xf32>
    %c0_29 = arith.constant 0 : index
    %c0_30 = arith.constant 0 : index
    %58 = vector.load %arg10[%c0_29, %c0_30] : memref<8x128xf32, #tpu.memory_space<vmem>>, vector<8x128xf32>
    tpu.vector_store %arg10[%c0_29, %c0_30], %57 {strides = array<i32>} : memref<8x128xf32, #tpu.memory_space<vmem>>, vector<8x128xf32>,
    return
  }
  func.func @transform_0(%arg0: i32) -> (i32, i32) {
    %c0_i32 = arith.constant 0 : i32
    %c0_i32_0 = arith.constant 0 : i32
    return %arg0, %c0_i32 : i32, i32
  }
  func.func @transform_1(%arg0: i32) -> (i32, i32) {
    %c0_i32 = arith.constant 0 : i32
    %c0_i32_0 = arith.constant 0 : i32
    %c0_i32_1 = arith.constant 0 : i32
    return %c0_i32, %c0_i32_0 : i32, i32
  }
  func.func @transform_2(%arg0: i32) -> (i32, i32) {
    %c0_i32 = arith.constant 0 : i32
    %c0_i32_0 = arith.constant 0 : i32
    %c0_i32_1 = arith.constant 0 : i32
    return %c0_i32, %c0_i32_0 : i32, i32
  }
  func.func @transform_3(%arg0: i32) -> (i32, i32) {
    %c0_i32 = arith.constant 0 : i32
    %c0_i32_0 = arith.constant 0 : i32
    %c0_i32_1 = arith.constant 0 : i32
    return %c0_i32, %c0_i32_0 : i32, i32
  }
  func.func @transform_4(%arg0: i32) -> (i32, i32) {
    %c0_i32 = arith.constant 0 : i32
    %c0_i32_0 = arith.constant 0 : i32
    %c0_i32_1 = arith.constant 0 : i32
    return %c0_i32, %c0_i32_0 : i32, i32
  }
  func.func @transform_5(%arg0: i32) -> (i32, i32) {
    %c0_i32 = arith.constant 0 : i32
    %c0_i32_0 = arith.constant 0 : i32
    %c0_i32_1 = arith.constant 0 : i32
    return %c0_i32, %c0_i32_0 : i32, i32
  }
  func.func @transform_6(%arg0: i32) -> (i32, i32) {
    %c0_i32 = arith.constant 0 : i32
    %c0_i32_0 = arith.constant 0 : i32
    %c0_i32_1 = arith.constant 0 : i32
    return %c0_i32, %c0_i32_0 : i32, i32
  }
  func.func @transform_7(%arg0: i32) -> (i32, i32) {
    %c0_i32 = arith.constant 0 : i32
    %c0_i32_0 = arith.constant 0 : i32
    return %arg0, %c0_i32 : i32, i32
  }
  func.func @transform_8(%arg0: i32) -> (i32, i32) {
    %c0_i32 = arith.constant 0 : i32
    %c0_i32_0 = arith.constant 0 : i32
    return %arg0, %c0_i32 : i32, i32
  }
  func.func @transform_9(%arg0: i32) -> (i32, i32) {
    %c0_i32 = arith.constant 0 : i32
    %c0_i32_0 = arith.constant 0 : i32
    return %arg0, %c0_i32 : i32, i32
  }
}

</mosaic_0001>

<llo_original>
// kernel: tpu_custom_call.1
$region0: #{tpu_custom_call.1}
  #allocation0 [shape = 'u32[]', space=smem, size = 0x4, offset = 0x4, fixed_abs, tag = 'smem constant byte address 0x4 - core index']
  #allocation1 [shape = 'u32[144,128]{1,0:T(1,128)}', space=vmem, size = 0x12000, scoped, tag = 'internal scratch']
  %s0 = inlined_call_operand.hbm [shape: f32[8,128], index: 0, kind: input, shape index: {}]
  %s1 = inlined_call_operand.hbm [shape: f32[128,128], index: 1, kind: input, shape index: {}]
  %s2 = inlined_call_operand.vmem [shape: f32[1,128], index: 2, kind: input, shape index: {}]
  %s3 = inlined_call_operand.hbm [shape: f32[128,128], index: 3, kind: input, shape index: {}]
  %s4 = inlined_call_operand.vmem [shape: f32[1,128], index: 4, kind: input, shape index: {}]
  %s5 = inlined_call_operand.hbm [shape: f32[128,256], index: 5, kind: input, shape index: {}]
  %s6 = inlined_call_operand.vmem [shape: f32[1,256], index: 6, kind: input, shape index: {}]
  %s7 = inlined_call_operand.vmem [shape: f32[8,128], index: 7, kind: input, shape index: {}]
  %s8 = inlined_call_operand.hbm [shape: f32[8,128], index: 8, kind: output, shape index: {0}]
  %s9 = inlined_call_operand.hbm [shape: f32[8,128], index: 9, kind: output, shape index: {1}]
  %10 = xla_tuple %s8, %s9
  %s11 = sld [smem:[#allocation0]]
  $region66: #{tpu_custom_call.1} parent=0
    _
  %s13 = ssub.s32 1, %s11
  %s14 = scalar_select 0, %s13, %s11
  $region1: #{tpu_custom_call.1} parent=0
    #allocation2 [shape = 'u8[4096]{0}', space=vmem, size = 0x1000, scoped, tag = 'input window, operand 0, single buffered']
    #allocation3 [shape = 's32[1]{0}', space=sflag, size = 0x4, scoped, tag = 'scoped memory for tpu_custom_call.1']
    #allocation4 [shape = 's32[1]{0}', space=sflag, size = 0x4, scoped, tag = 'scoped memory for tpu_custom_call.1']
    #allocation5 [shape = 'u8[65536]{0}', space=vmem, size = 0x10000, scoped, tag = 'input window, operand 1, single buffered']
    #allocation6 [shape = 's32[1]{0}', space=sflag, size = 0x4, scoped, tag = 'scoped memory for tpu_custom_call.1']
    #allocation7 [shape = 'u8[65536]{0}', space=vmem, size = 0x10000, scoped, tag = 'input window, operand 3, single buffered']
    #allocation8 [shape = 'u8[131072]{0}', space=vmem, size = 0x20000, scoped, tag = 'input window, operand 5, single buffered']
    #allocation9 [shape = 's32[1]{0}', space=sflag, size = 0x4, scoped, tag = 'scoped memory for tpu_custom_call.1']
    #allocation10 [shape = 'u8[4096]{0}', space=vmem, size = 0x1000, scoped, tag = 'output window, operand 0, single buffered']
    #allocation11 [shape = 'u8[4096]{0}', space=vmem, size = 0x1000, scoped, tag = 'output window, operand 1, single buffered']
    #allocation12 [shape = 's32[1]{0}', space=sflag, size = 0x4, scoped, tag = 'scoped memory for tpu_custom_call.1']
    %15 = vsyncpa [#allocation3], 0
    %16 = vsyncpa [#allocation6], 0
    %17 = vsyncpa [#allocation9], 0
    %18 = vsyncpa [#allocation4], 0
    %19 = vsyncpa [#allocation12], 0
    // Predicated region
    $region2: #{tpu_custom_call.1} parent=1 // pred_check
      _
    $region3: #{tpu_custom_call.1} parent=1 // pred_check_branch
      %21 = sbr.rel (0) target = $region5
    $region4: #{tpu_custom_call.1} parent=1 // pred_region
      %s23 = ssub.s32 128, 128
      %24 = vsyncadd [#allocation3], %s23
      %s26 = sshll.u32 [#allocation2], 4
      %s27 = int_to_ptr.vmem [resolvable:$true] %s26
      %29 = dma.hbm_to_vmem [thread:$0]  %s0, 128, %s27, [#allocation3]
    $region5: #{tpu_custom_call.1} parent=1 // pred_fallthru
      _
    // Predicated region
    $region6: #{tpu_custom_call.1} parent=1 // pred_check
      _
    $region7: #{tpu_custom_call.1} parent=1 // pred_check_branch
      %31 = sbr.rel (0) target = $region9
    $region8: #{tpu_custom_call.1} parent=1 // pred_region
      %s33 = ssub.s32 2048, 2048
      %34 = vsyncadd [#allocation6], %s33
      %s35 = sshll.u32 [#allocation5], 4
      %s36 = int_to_ptr.vmem [resolvable:$true] %s35
      %41 = dma.hbm_to_vmem [thread:$0]  %s1, 2048, %s36, [#allocation6], 128, 128, 8
    $region9: #{tpu_custom_call.1} parent=1 // pred_fallthru
      _
    // Predicated region
    $region10: #{tpu_custom_call.1} parent=1 // pred_check
      _
    $region11: #{tpu_custom_call.1} parent=1 // pred_check_branch
      %43 = sbr.rel (0) target = $region13
    $region12: #{tpu_custom_call.1} parent=1 // pred_region
      _
    $region13: #{tpu_custom_call.1} parent=1 // pred_fallthru
      _
    // Predicated region
    $region14: #{tpu_custom_call.1} parent=1 // pred_check
      _
    $region15: #{tpu_custom_call.1} parent=1 // pred_check_branch
      %45 = sbr.rel (0) target = $region17
    $region16: #{tpu_custom_call.1} parent=1 // pred_region
      %s47 = ssub.s32 2048, 2048
      %48 = vsyncadd [#allocation6], %s47
      %s49 = sshll.u32 [#allocation7], 4
      %s50 = int_to_ptr.vmem [resolvable:$true] %s49
      %55 = dma.hbm_to_vmem [thread:$0]  %s3, 2048, %s50, [#allocation6], 128, 128, 8
    $region17: #{tpu_custom_call.1} parent=1 // pred_fallthru
      _
    // Predicated region
    $region18: #{tpu_custom_call.1} parent=1 // pred_check
      _
    $region19: #{tpu_custom_call.1} parent=1 // pred_check_branch
      %57 = sbr.rel (0) target = $region21
    $region20: #{tpu_custom_call.1} parent=1 // pred_region
      _
    $region21: #{tpu_custom_call.1} parent=1 // pred_fallthru
      _
    // Predicated region
    $region22: #{tpu_custom_call.1} parent=1 // pred_check
      _
    $region23: #{tpu_custom_call.1} parent=1 // pred_check_branch
      %59 = sbr.rel (0) target = $region25
    $region24: #{tpu_custom_call.1} parent=1 // pred_region
      %s61 = ssub.s32 4096, 4096
      %62 = vsyncadd [#allocation9], %s61
      %s63 = sshll.u32 [#allocation8], 4
      %s64 = int_to_ptr.vmem [resolvable:$true] %s63
      %69 = dma.hbm_to_vmem [thread:$0]  %s5, 4096, %s64, [#allocation9], 256, 256, 16
    $region25: #{tpu_custom_call.1} parent=1 // pred_fallthru
      _
    // Predicated region
    $region26: #{tpu_custom_call.1} parent=1 // pred_check
      _
    $region27: #{tpu_custom_call.1} parent=1 // pred_check_branch
      %71 = sbr.rel (0) target = $region29
    $region28: #{tpu_custom_call.1} parent=1 // pred_region
      _
    $region29: #{tpu_custom_call.1} parent=1 // pred_fallthru
      _
    // Predicated region
    $region30: #{tpu_custom_call.1} parent=1 // pred_check
      _
    $region31: #{tpu_custom_call.1} parent=1 // pred_check_branch
      %73 = sbr.rel (0) target = $region33
    $region32: #{tpu_custom_call.1} parent=1 // pred_region
      _
    $region33: #{tpu_custom_call.1} parent=1 // pred_fallthru
      _
    // Predicated region
    $region34: #{tpu_custom_call.1} parent=1 // pred_check
      _
    $region35: #{tpu_custom_call.1} parent=1 // pred_check_branch
      %75 = sbr.rel (0) target = $region37
    $region36: #{tpu_custom_call.1} parent=1 // pred_region
      %76 = dma.done [#allocation3], 128
    $region37: #{tpu_custom_call.1} parent=1 // pred_fallthru
      _
    // Predicated region
    $region38: #{tpu_custom_call.1} parent=1 // pred_check
      _
    $region39: #{tpu_custom_call.1} parent=1 // pred_check_branch
      %78 = sbr.rel (0) target = $region41
    $region40: #{tpu_custom_call.1} parent=1 // pred_region
      %79 = dma.done [#allocation6], 2048
    $region41: #{tpu_custom_call.1} parent=1 // pred_fallthru
      _
    // Predicated region
    $region42: #{tpu_custom_call.1} parent=1 // pred_check
      _
    $region43: #{tpu_custom_call.1} parent=1 // pred_check_branch
      %81 = sbr.rel (0) target = $region45
    $region44: #{tpu_custom_call.1} parent=1 // pred_region
      %82 = dma.done [#allocation6], 2048
    $region45: #{tpu_custom_call.1} parent=1 // pred_fallthru
      _
    // Predicated region
    $region46: #{tpu_custom_call.1} parent=1 // pred_check
      _
    $region47: #{tpu_custom_call.1} parent=1 // pred_check_branch
      %84 = sbr.rel (0) target = $region49
    $region48: #{tpu_custom_call.1} parent=1 // pred_region
      %85 = dma.done [#allocation9], 4096
    $region49: #{tpu_custom_call.1} parent=1 // pred_fallthru
      _
    %v86 = vld [vmem:[#allocation2] sm:$0xff]
    %v87 = vld [vmem:[#allocation5] sm:$0xff]
    %v88 = vld [vmem:[#allocation5 + $0x8] sm:$0xff]
    %v89 = vld [vmem:[#allocation5 + $0x10] sm:$0xff]
    %v90 = vld [vmem:[#allocation5 + $0x18] sm:$0xff]
    %v91 = vld [vmem:[#allocation5 + $0x20] sm:$0xff]
    %v92 = vld [vmem:[#allocation5 + $0x28] sm:$0xff]
    %v93 = vld [vmem:[#allocation5 + $0x30] sm:$0xff]
    %v94 = vld [vmem:[#allocation5 + $0x38] sm:$0xff]
    %v95 = vld [vmem:[#allocation5 + $0x40] sm:$0xff]
    %v96 = vld [vmem:[#allocation5 + $0x48] sm:$0xff]
    %v97 = vld [vmem:[#allocation5 + $0x50] sm:$0xff]
    %v98 = vld [vmem:[#allocation5 + $0x58] sm:$0xff]
    %v99 = vld [vmem:[#allocation5 + $0x60] sm:$0xff]
    %v100 = vld [vmem:[#allocation5 + $0x68] sm:$0xff]
    %v101 = vld [vmem:[#allocation5 + $0x70] sm:$0xff]
    %v102 = vld [vmem:[#allocation5 + $0x78] sm:$0xff]
    %v103 = vld [vmem:[%s2] sm:$0x1]
    %v105 = vlaneseq
    %v106 = vshrl.u32 %v105, 7
    %v107 = vsub.s32 0, %v106
    %v108 = vrot.slane %v103, %v107
    %110 = vmatprep.subr.mxu0 0.0
    %111 = vmatpush1.msra.mxu0 %v87
    %112 = vmatprep.subr.mxu0 0.0
    %113 = vmatpush1.msra.mxu0 %v88
    %114 = vmatprep.subr.mxu0 0.0
    %115 = vmatpush1.msra.mxu0 %v89
    %116 = vmatprep.subr.mxu0 0.0
    %117 = vmatpush1.msra.mxu0 %v90
    %118 = vmatprep.subr.mxu0 0.0
    %119 = vmatpush1.msra.mxu0 %v91
    %120 = vmatprep.subr.mxu0 0.0
    %121 = vmatpush1.msra.mxu0 %v92
    %122 = vmatprep.subr.mxu0 0.0
    %123 = vmatpush1.msra.mxu0 %v93
    %124 = vmatprep.subr.mxu0 0.0
    %125 = vmatpush1.msra.mxu0 %v94
    %126 = vmatprep.subr.mxu0 0.0
    %127 = vmatpush1.msra.mxu0 %v95
    %128 = vmatprep.subr.mxu0 0.0
    %129 = vmatpush1.msra.mxu0 %v96
    %130 = vmatprep.subr.mxu0 0.0
    %131 = vmatpush1.msra.mxu0 %v97
    %132 = vmatprep.subr.mxu0 0.0
    %133 = vmatpush1.msra.mxu0 %v98
    %134 = vmatprep.subr.mxu0 0.0
    %135 = vmatpush1.msra.mxu0 %v99
    %136 = vmatprep.subr.mxu0 0.0
    %137 = vmatpush1.msra.mxu0 %v100
    %138 = vmatprep.subr.mxu0 0.0
    %139 = vmatpush1.msra.mxu0 %v101
    %140 = vmatprep.subr.mxu0 0.0
    %141 = vmatpush1.msra.mxu0 %v102
    %142 = vmatprep.subr.mxu0 0.0
    %143 = vmatpush1.msra.mxu0 0.0
    %144 = vmatprep.subr.mxu0 0.0
    %145 = vmatpush1.msra.mxu0 0.0
    %146 = vmatprep.subr.mxu0 0.0
    %147 = vmatpush1.msra.mxu0 0.0
    %148 = vmatprep.subr.mxu0 0.0
    %149 = vmatpush1.msra.mxu0 0.0
    %150 = vmatprep.subr.mxu0 0.0
    %151 = vmatpush1.msra.mxu0 0.0
    %152 = vmatprep.subr.mxu0 0.0
    %153 = vmatpush1.msra.mxu0 0.0
    %154 = vmatprep.subr.mxu0 0.0
    %155 = vmatpush1.msra.mxu0 0.0
    %156 = vmatprep.subr.mxu0 0.0
    %157 = vmatpush1.msra.mxu0 0.0
    %158 = vmatprep.subr.mxu0 0.0
    %159 = vmatpush1.msra.mxu0 0.0
    %160 = vmatprep.subr.mxu0 0.0
    %161 = vmatpush1.msra.mxu0 0.0
    %162 = vmatprep.subr.mxu0 0.0
    %163 = vmatpush1.msra.mxu0 0.0
    %164 = vmatprep.subr.mxu0 0.0
    %165 = vmatpush1.msra.mxu0 0.0
    %166 = vmatprep.subr.mxu0 0.0
    %167 = vmatpush1.msra.mxu0 0.0
    %168 = vmatprep.subr.mxu0 0.0
    %169 = vmatpush1.msra.mxu0 0.0
    %170 = vmatprep.subr.mxu0 0.0
    %171 = vmatpush1.msra.mxu0 0.0
    %172 = vmatprep.subr.mxu0 0.0
    %173 = vmatpush1.msra.mxu0 0.0
    %174 = vmatprep.mubr.f32.mxu0 0.0
    %175 = vmatmul.mubr.f32.gmra.mrb[0].mxu0 %v86
    %v176 = vpop.f32.mrb[0].mxu0
    %v177 = vadd.f32 %v108, %v176
    %v178 = vpop.f32.mrb[0].mxu0
    %179 = vdwg.mxu0
    %v180 = vmax.f32 %v177, 0.0
    %v181 = vld [vmem:[#allocation7] sm:$0xff]
    %v182 = vld [vmem:[#allocation7 + $0x8] sm:$0xff]
    %v183 = vld [vmem:[#allocation7 + $0x10] sm:$0xff]
    %v184 = vld [vmem:[#allocation7 + $0x18] sm:$0xff]
    %v185 = vld [vmem:[#allocation7 + $0x20] sm:$0xff]
    %v186 = vld [vmem:[#allocation7 + $0x28] sm:$0xff]
    %v187 = vld [vmem:[#allocation7 + $0x30] sm:$0xff]
    %v188 = vld [vmem:[#allocation7 + $0x38] sm:$0xff]
    %v189 = vld [vmem:[#allocation7 + $0x40] sm:$0xff]
    %v190 = vld [vmem:[#allocation7 + $0x48] sm:$0xff]
    %v191 = vld [vmem:[#allocation7 + $0x50] sm:$0xff]
    %v192 = vld [vmem:[#allocation7 + $0x58] sm:$0xff]
    %v193 = vld [vmem:[#allocation7 + $0x60] sm:$0xff]
    %v194 = vld [vmem:[#allocation7 + $0x68] sm:$0xff]
    %v195 = vld [vmem:[#allocation7 + $0x70] sm:$0xff]
    %v196 = vld [vmem:[#allocation7 + $0x78] sm:$0xff]
    %v197 = vld [vmem:[%s4] sm:$0x1]
    %v199 = vlaneseq
    %v200 = vshrl.u32 %v199, 7
    %v201 = vsub.s32 0, %v200
    %v202 = vrot.slane %v197, %v201
    %204 = vmatprep.subr.mxu0 0.0
    %205 = vmatpush1.msra.mxu0 %v181
    %206 = vmatprep.subr.mxu0 0.0
    %207 = vmatpush1.msra.mxu0 %v182
    %208 = vmatprep.subr.mxu0 0.0
    %209 = vmatpush1.msra.mxu0 %v183
    %210 = vmatprep.subr.mxu0 0.0
    %211 = vmatpush1.msra.mxu0 %v184
    %212 = vmatprep.subr.mxu0 0.0
    %213 = vmatpush1.msra.mxu0 %v185
    %214 = vmatprep.subr.mxu0 0.0
    %215 = vmatpush1.msra.mxu0 %v186
    %216 = vmatprep.subr.mxu0 0.0
    %217 = vmatpush1.msra.mxu0 %v187
    %218 = vmatprep.subr.mxu0 0.0
    %219 = vmatpush1.msra.mxu0 %v188
    %220 = vmatprep.subr.mxu0 0.0
    %221 = vmatpush1.msra.mxu0 %v189
    %222 = vmatprep.subr.mxu0 0.0
    %223 = vmatpush1.msra.mxu0 %v190
    %224 = vmatprep.subr.mxu0 0.0
    %225 = vmatpush1.msra.mxu0 %v191
    %226 = vmatprep.subr.mxu0 0.0
    %227 = vmatpush1.msra.mxu0 %v192
    %228 = vmatprep.subr.mxu0 0.0
    %229 = vmatpush1.msra.mxu0 %v193
    %230 = vmatprep.subr.mxu0 0.0
    %231 = vmatpush1.msra.mxu0 %v194
    %232 = vmatprep.subr.mxu0 0.0
    %233 = vmatpush1.msra.mxu0 %v195
    %234 = vmatprep.subr.mxu0 0.0
    %235 = vmatpush1.msra.mxu0 %v196
    %236 = vmatprep.subr.mxu0 0.0
    %237 = vmatpush1.msra.mxu0 0.0
    %238 = vmatprep.subr.mxu0 0.0
    %239 = vmatpush1.msra.mxu0 0.0
    %240 = vmatprep.subr.mxu0 0.0
    %241 = vmatpush1.msra.mxu0 0.0
    %242 = vmatprep.subr.mxu0 0.0
    %243 = vmatpush1.msra.mxu0 0.0
    %244 = vmatprep.subr.mxu0 0.0
    %245 = vmatpush1.msra.mxu0 0.0
    %246 = vmatprep.subr.mxu0 0.0
    %247 = vmatpush1.msra.mxu0 0.0
    %248 = vmatprep.subr.mxu0 0.0
    %249 = vmatpush1.msra.mxu0 0.0
    %250 = vmatprep.subr.mxu0 0.0
    %251 = vmatpush1.msra.mxu0 0.0
    %252 = vmatprep.subr.mxu0 0.0
    %253 = vmatpush1.msra.mxu0 0.0
    %254 = vmatprep.subr.mxu0 0.0
    %255 = vmatpush1.msra.mxu0 0.0
    %256 = vmatprep.subr.mxu0 0.0
    %257 = vmatpush1.msra.mxu0 0.0
    %258 = vmatprep.subr.mxu0 0.0
    %259 = vmatpush1.msra.mxu0 0.0
    %260 = vmatprep.subr.mxu0 0.0
    %261 = vmatpush1.msra.mxu0 0.0
    %262 = vmatprep.subr.mxu0 0.0
    %263 = vmatpush1.msra.mxu0 0.0
    %264 = vmatprep.subr.mxu0 0.0
    %265 = vmatpush1.msra.mxu0 0.0
    %266 = vmatprep.subr.mxu0 0.0
    %267 = vmatpush1.msra.mxu0 0.0
    %268 = vmatprep.mubr.f32.mxu0 0.0
    %269 = vmatmul.mubr.f32.gmra.mrb[0].mxu0 %v180
    %v270 = vpop.f32.mrb[0].mxu0
    %v271 = vadd.f32 %v202, %v270
    %v272 = vpop.f32.mrb[0].mxu0
    %273 = vdwg.mxu0
    %v274 = vmax.f32 %v271, 0.0
    %v275 = vld [vmem:[#allocation8] sm:$0xff]
    %v276 = vld [vmem:[#allocation8 + $0x8] sm:$0xff]
    %v277 = vld [vmem:[#allocation8 + $0x10] sm:$0xff]
    %v278 = vld [vmem:[#allocation8 + $0x18] sm:$0xff]
    %v279 = vld [vmem:[#allocation8 + $0x20] sm:$0xff]
    %v280 = vld [vmem:[#allocation8 + $0x28] sm:$0xff]
    %v281 = vld [vmem:[#allocation8 + $0x30] sm:$0xff]
    %v282 = vld [vmem:[#allocation8 + $0x38] sm:$0xff]
    %v283 = vld [vmem:[#allocation8 + $0x40] sm:$0xff]
    %v284 = vld [vmem:[#allocation8 + $0x48] sm:$0xff]
    %v285 = vld [vmem:[#allocation8 + $0x50] sm:$0xff]
    %v286 = vld [vmem:[#allocation8 + $0x58] sm:$0xff]
    %v287 = vld [vmem:[#allocation8 + $0x60] sm:$0xff]
    %v288 = vld [vmem:[#allocation8 + $0x68] sm:$0xff]
    %v289 = vld [vmem:[#allocation8 + $0x70] sm:$0xff]
    %v290 = vld [vmem:[#allocation8 + $0x78] sm:$0xff]
    %v291 = vld [vmem:[#allocation8 + $0x80] sm:$0xff]
    %v292 = vld [vmem:[#allocation8 + $0x88] sm:$0xff]
    %v293 = vld [vmem:[#allocation8 + $0x90] sm:$0xff]
    %v294 = vld [vmem:[#allocation8 + $0x98] sm:$0xff]
    %v295 = vld [vmem:[#allocation8 + $0xa0] sm:$0xff]
    %v296 = vld [vmem:[#allocation8 + $0xa8] sm:$0xff]
    %v297 = vld [vmem:[#allocation8 + $0xb0] sm:$0xff]
    %v298 = vld [vmem:[#allocation8 + $0xb8] sm:$0xff]
    %v299 = vld [vmem:[#allocation8 + $0xc0] sm:$0xff]
    %v300 = vld [vmem:[#allocation8 + $0xc8] sm:$0xff]
    %v301 = vld [vmem:[#allocation8 + $0xd0] sm:$0xff]
    %v302 = vld [vmem:[#allocation8 + $0xd8] sm:$0xff]
    %v303 = vld [vmem:[#allocation8 + $0xe0] sm:$0xff]
    %v304 = vld [vmem:[#allocation8 + $0xe8] sm:$0xff]
    %v305 = vld [vmem:[#allocation8 + $0xf0] sm:$0xff]
    %v306 = vld [vmem:[#allocation8 + $0xf8] sm:$0xff]
    %v307 = vld [vmem:[%s6] sm:$0x3]
    %v309 = vlaneseq
    %v310 = vshrl.u32 %v309, 7
    %v311 = vsub.s32 0, %v310
    %v312 = vrot.slane %v307, %v311
    %v313 = vlaneseq
    %v314 = vshrl.u32 %v313, 7
    %v315 = vsub.s32 1, %v314
    %v316 = vrot.slane %v307, %v315
    %319 = vmatprep.subr.mxu0 %v276
    %320 = vmatpush1.msra.mxu0 %v275
    %321 = vmatprep.subr.mxu0 %v278
    %322 = vmatpush1.msra.mxu0 %v277
    %323 = vmatprep.subr.mxu0 %v280
    %324 = vmatpush1.msra.mxu0 %v279
    %325 = vmatprep.subr.mxu0 %v282
    %326 = vmatpush1.msra.mxu0 %v281
    %327 = vmatprep.subr.mxu0 %v284
    %328 = vmatpush1.msra.mxu0 %v283
    %329 = vmatprep.subr.mxu0 %v286
    %330 = vmatpush1.msra.mxu0 %v285
    %331 = vmatprep.subr.mxu0 %v288
    %332 = vmatpush1.msra.mxu0 %v287
    %333 = vmatprep.subr.mxu0 %v290
    %334 = vmatpush1.msra.mxu0 %v289
    %335 = vmatprep.subr.mxu0 %v292
    %336 = vmatpush1.msra.mxu0 %v291
    %337 = vmatprep.subr.mxu0 %v294
    %338 = vmatpush1.msra.mxu0 %v293
    %339 = vmatprep.subr.mxu0 %v296
    %340 = vmatpush1.msra.mxu0 %v295
    %341 = vmatprep.subr.mxu0 %v298
    %342 = vmatpush1.msra.mxu0 %v297
    %343 = vmatprep.subr.mxu0 %v300
    %344 = vmatpush1.msra.mxu0 %v299
    %345 = vmatprep.subr.mxu0 %v302
    %346 = vmatpush1.msra.mxu0 %v301
    %347 = vmatprep.subr.mxu0 %v304
    %348 = vmatpush1.msra.mxu0 %v303
    %349 = vmatprep.subr.mxu0 %v306
    %350 = vmatpush1.msra.mxu0 %v305
    %351 = vmatprep.subr.mxu0 0.0
    %352 = vmatpush1.msra.mxu0 0.0
    %353 = vmatprep.subr.mxu0 0.0
    %354 = vmatpush1.msra.mxu0 0.0
    %355 = vmatprep.subr.mxu0 0.0
    %356 = vmatpush1.msra.mxu0 0.0
    %357 = vmatprep.subr.mxu0 0.0
    %358 = vmatpush1.msra.mxu0 0.0
    %359 = vmatprep.subr.mxu0 0.0
    %360 = vmatpush1.msra.mxu0 0.0
    %361 = vmatprep.subr.mxu0 0.0
    %362 = vmatpush1.msra.mxu0 0.0
    %363 = vmatprep.subr.mxu0 0.0
    %364 = vmatpush1.msra.mxu0 0.0
    %365 = vmatprep.subr.mxu0 0.0
    %366 = vmatpush1.msra.mxu0 0.0
    %367 = vmatprep.subr.mxu0 0.0
    %368 = vmatpush1.msra.mxu0 0.0
    %369 = vmatprep.subr.mxu0 0.0
    %370 = vmatpush1.msra.mxu0 0.0
    %371 = vmatprep.subr.mxu0 0.0
    %372 = vmatpush1.msra.mxu0 0.0
    %373 = vmatprep.subr.mxu0 0.0
    %374 = vmatpush1.msra.mxu0 0.0
    %375 = vmatprep.subr.mxu0 0.0
    %376 = vmatpush1.msra.mxu0 0.0
    %377 = vmatprep.subr.mxu0 0.0
    %378 = vmatpush1.msra.mxu0 0.0
    %379 = vmatprep.subr.mxu0 0.0
    %380 = vmatpush1.msra.mxu0 0.0
    %381 = vmatprep.subr.mxu0 0.0
    %382 = vmatpush1.msra.mxu0 0.0
    %383 = vmatprep.mubr.f32.mxu0 0.0
    %384 = vmatmul.mubr.f32.gmra.mrb[0].mxu0 %v274
    %v385 = vpop.f32.mrb[0].mxu0
    %v386 = vadd.f32 %v312, %v385
    %v387 = vpop.f32.mrb[0].mxu0
    %v388 = vadd.f32 %v316, %v387
    %389 = vdwg.mxu0
    %v390 = vmax.f32 %v388, -5.0
    %v391 = vmin.f32 %v390, 2.0
    %v392 = vmul.f32 %v391, 1.442695
    %v393 = vpow.pop %v392
    %v394 = vld [vmem:[%s7] sm:$0xff]
    %v395 = vmul.f32 %v393, %v394
    %v396 = vadd.f32 %v386, %v395
    %v397 = vtanh.pop %v396
    %v398 = vmul.f32 %v394, %v394
    %v399 = vmul.f32 %v398, -0.5
    %v400 = vsub.f32 %v399, %v391
    %v401 = vsub.f32 %v400, 0.9189385
    %v402 = vmul.f32 %v397, %v397
    %v403 = vsub.f32 1.0, %v402
    %v404 = vadd.f32 %v403, 1e-06
    %v405 = vlog2.pop %v404
    %v406 = vmul.f32 %v405, 0.6931472
    %v407 = vlaneseq
    %v408 = vand.u32 %v407, 127
    %vm409 = vcmp.lt.s32.totalorder %v408, 8
    %v410 = vsel %vm409, 1, 0
    %v411 = vcvt.s32.f32 %v410
    %v412 = vsub.f32 %v401, %v406
    %v413 = vmul.f32 %v412, %v411
    %414 = vadd.xlane.f32.xlu0 %v413
    %v415 = vpop.xlane.xlu0 %414
    %416 = vst [vmem:[#allocation10] sm:$0xff] %v397
    %417 = vst [vmem:[#allocation11] sm:$0xff] %v415
    // Predicated region
    $region50: #{tpu_custom_call.1} parent=1 // pred_check
      _
    $region51: #{tpu_custom_call.1} parent=1 // pred_check_branch
      %419 = sbr.rel (0) target = $region53
    $region52: #{tpu_custom_call.1} parent=1 // pred_region
      %s421 = ssub.s32 128, 128
      %422 = vsyncadd [#allocation4], %s421
      %s424 = sshll.u32 [#allocation10], 4
      %s425 = int_to_ptr.vmem [resolvable:$true] %s424
      %427 = dma.vmem_to_hbm [thread:$0]  %s425, 128, %s8, [#allocation4]
    $region53: #{tpu_custom_call.1} parent=1 // pred_fallthru
      _
    // Predicated region
    $region54: #{tpu_custom_call.1} parent=1 // pred_check
      _
    $region55: #{tpu_custom_call.1} parent=1 // pred_check_branch
      %429 = sbr.rel (0) target = $region57
    $region56: #{tpu_custom_call.1} parent=1 // pred_region
      %s431 = ssub.s32 128, 128
      %432 = vsyncadd [#allocation12], %s431
      %s434 = sshll.u32 [#allocation11], 4
      %s435 = int_to_ptr.vmem [resolvable:$true] %s434
      %437 = dma.vmem_to_hbm [thread:$0]  %s435, 128, %s9, [#allocation12]
    $region57: #{tpu_custom_call.1} parent=1 // pred_fallthru
      _
    // Predicated region
    $region58: #{tpu_custom_call.1} parent=1 // pred_check
      _
    $region59: #{tpu_custom_call.1} parent=1 // pred_check_branch
      %439 = sbr.rel (0) target = $region61
    $region60: #{tpu_custom_call.1} parent=1 // pred_region
      %440 = dma.done [#allocation4], 128
    $region61: #{tpu_custom_call.1} parent=1 // pred_fallthru
      _
    // Predicated region
    $region62: #{tpu_custom_call.1} parent=1 // pred_check
      _
    $region63: #{tpu_custom_call.1} parent=1 // pred_check_branch
      %442 = sbr.rel (0) target = $region65
    $region64: #{tpu_custom_call.1} parent=1 // pred_region
      %443 = dma.done [#allocation12], 128
    $region65: #{tpu_custom_call.1} parent=1 // pred_fallthru
      _
    %444 = vsyncpa [#allocation3], 1
    %445 = vsyncpa [#allocation6], 1
    %446 = vsyncpa [#allocation9], 1
    %447 = vsyncpa [#allocation4], 1
    %448 = vsyncpa [#allocation12], 1

</llo_original>
